<compile_context>
chip_gen: v6e
topology: v6e:2x2x1
jax: 0.10.0
libtpu: 0.0.40
codegen_flags: <defaults>
</compile_context>

<pallas_src>
import jax
import jax.numpy as jnp
from jax.experimental import pallas as pl
from jax.experimental.pallas import tpu as pltpu


def beamform_kernel(iq_ref, w_ref, out_ref):
    # iq_ref: (tm, K) f32 folded rows, w_ref: (K, 2F) f32 block-diagonal weight,
    # out_ref: (tm, 2F) f32.  One MXU matmul per grid step; DMA-bound.
    out_ref[...] = jnp.dot(
        iq_ref[...], w_ref[...], preferred_element_type=jnp.float32
    ).astype(out_ref.dtype)


def make_complex_weight_matrix(weights):
    """Interleaved weights (1, C, 1) -> (C, 2) real matrix W so that
    iq_row @ W == [out_real, out_imag] for that row."""
    w = weights[0, :, 0]                                   # (C,)
    wr = w[0::2]                                           # real parts (C//2,)
    wi = w[1::2]                                           # imag parts (C//2,)
    col_real = jnp.stack([wr, -wi], axis=1).reshape(-1)    # (C,)
    col_imag = jnp.stack([wi, wr], axis=1).reshape(-1)     # (C,)
    return jnp.stack([col_real, col_imag], axis=1)         # (C, 2)


def _chip_defaults():
    """Per-generation (row_tile, fold_target_K).  Safe fallback if kind is unknown."""
    try:
        kind = jax.devices()[0].device_kind.lower()
    except Exception:
        kind = ""
    if "v5" in kind:
        return 4096, 256       # v5e: 2048-4096 already near roofline
    if "v6" in kind:
        return 8192, 256       # v6e: 4-8 MiB steps reach ~90% of HBM roofline
    if "v7" in kind or "7x" in kind:
        return 16384, 256      # v7x: fast HBM needs big steps; 2 TCs share the grid
    return 8192, 256


def beamform(iq_data, weights, *, tm=None, k_target=None):
    """iq_data: (B, N, C) f32, weights: (1, C, 1) f32 -> (B, N, 2) f32."""
    B, N, C = iq_data.shape
    assert C % 2 == 0, "interleaved complex channels require even C"

    iq = iq_data.astype(jnp.float32)
    W = make_complex_weight_matrix(weights.astype(jnp.float32))       # (C, 2)

    d_tm, d_k = _chip_defaults()
    tm = d_tm if tm is None else tm
    k_target = d_k if k_target is None else k_target

    # Fold F consecutive rows into one lane-dense row of length K = F*C.
    # (For C >= k_target, or C not dividing k_target, F degrades gracefully.)
    F = max(1, k_target // C) if C < k_target else 1
    K = F * C
    out_w = 2 * F                                                     # output lanes

    R = B * N                         # original (flat) rows; batch folded in for free
    iq_flat = iq.reshape(R, C)        # contiguous reshape, no HBM copy
    M = R // F                        # folded rows fed to the kernel
    R_main = M * F
    rem = R - R_main                  # < F leftover rows (tiny)

    if M == 0:
        # Fewer than F rows total: the kernel would be pure overhead.
        out_flat = iq_flat @ W
        return out_flat.reshape(B, N, 2)

    # Block-diagonal weight: each C-chunk of a folded row maps to its own 2 columns.
    W_big = jnp.kron(jnp.eye(F, dtype=jnp.float32), W)                # (K, 2F)

    # Main rows: contiguous reshape when R % F == 0 (common case, zero copies).
    # Otherwise slice off only the foldable prefix; the < F tail is a tiny jnp matmul.
    iq_main = iq_flat if rem == 0 else iq_flat[:R_main]
    iq2 = iq_main.reshape(M, K)

    # ---- tiling ------------------------------------------------------------------
    # Clamp the row tile to the problem size and keep it a multiple of 8 sublanes.
    tm = max(8, min(tm, pl.cdiv(M, 8) * 8))
    # Prefer an even number of (roughly equal) grid steps when there is real work, so
    # v7x's two TensorCores split the parallel axis without a 50% imbalance.
    steps = pl.cdiv(M, tm)
    if M >= 2048 and steps % 2 == 1:
        steps += 1
        tm = max(8, pl.cdiv(pl.cdiv(M, steps), 8) * 8)
        steps = pl.cdiv(M, tm)

    # Scoped VMEM: double-buffered input + output tiles + resident weight, plus slack.
    needed_vmem = 2 * (tm * K * 4) + 2 * (tm * out_w * 4) + 2 * (K * out_w * 4)
    vmem_limit = int(min(max(needed_vmem + (8 << 20), 32 << 20), 48 << 20))

    # Useful work only (no block-diagonal inflation); true HBM traffic.
    cost = pl.CostEstimate(
        flops=2 * R * C * 2,
        transcendentals=0,
        bytes_accessed=4 * (R * C + C * 2 + R * 2),
    )

    out2 = pl.pallas_call(
        beamform_kernel,
        out_shape=jax.ShapeDtypeStruct((M, out_w), jnp.float32),
        grid_spec=pltpu.PrefetchScalarGridSpec(
            num_scalar_prefetch=0,
            grid=(steps,),                                   # ragged last block masked
            in_specs=[
                pl.BlockSpec((tm, K), lambda i: (i, 0)),     # folded iq tile
                pl.BlockSpec((K, out_w), lambda i: (0, 0)),  # weight, resident
                # NOTE: pipeline_mode=pl.Buffered(3) on the iq spec is a small (<5%)
                # optional win on v7x only; kept at the default 2-deep for safety.
            ],
            out_specs=pl.BlockSpec((tm, out_w), lambda i: (i, 0)),
        ),
        compiler_params=pltpu.CompilerParams(
            dimension_semantics=("parallel",),
            vmem_limit_bytes=vmem_limit,
        ),
        cost_estimate=cost,
    )(iq2, W_big)

    # Un-fold: folded row g, sub-row f -> flat row g*F + f, columns (real, imag).
    out_flat = out2.reshape(M * F, 2)
    if rem:
        tail_out = iq_flat[R_main:] @ W                      # tiny (< F rows) matmul
        out_flat = jnp.concatenate([out_flat, tail_out], axis=0)
    return out_flat.reshape(B, N, 2)


def beamform_reference(iq_data, weights):
    """Pure-JAX port of the PyTorch forward for verification."""
    out_real = jnp.matmul(iq_data[:, :, 0::2], weights[:, 0::2]) \
             - jnp.matmul(iq_data[:, :, 1::2], weights[:, 1::2])
    out_imag = jnp.matmul(iq_data[:, :, 0::2], weights[:, 1::2]) \
             + jnp.matmul(iq_data[:, :, 1::2], weights[:, 0::2])
    return jnp.concatenate([out_real, out_imag], axis=2)


if __name__ == "__main__":
    key = jax.random.PRNGKey(0)
    k_iq, k_w, k_iq2 = jax.random.split(key, 3)

    # Small shapes consistent with the module (weights are (1, 8, 1) -> C = 8).
    B, N, C = 2, 16, 8
    iq_data = jax.random.normal(k_iq, (B, N, C), dtype=jnp.float32)
    weights = jax.random.normal(k_w, (1, C, 1), dtype=jnp.float32)

    out = jax.block_until_ready(beamform(iq_data, weights))
    ref = beamform_reference(iq_data, weights)
    assert out.shape == (B, N, 2), out.shape
    assert jnp.allclose(out, ref, atol=1e-5, rtol=1e-5), "mismatch vs reference"

    # Ragged B*N (not a multiple of the fold factor) exercises the tail path.
    N2 = 21
    iq_ragged = jax.random.normal(k_iq2, (B, N2, C), dtype=jnp.float32)
    out2 = jax.block_until_ready(beamform(iq_ragged, weights))
    ref2 = beamform_reference(iq_ragged, weights)
    assert out2.shape == (B, N2, 2), out2.shape
    assert jnp.allclose(out2, ref2, atol=1e-5, rtol=1e-5), "ragged mismatch vs reference"

    print("KERNEL_OK")
</pallas_src>

<mosaic_0001>
module attributes {stable_mosaic.version = 11 : i64} {
  func.func @beamform_kernel(%arg0: i32, %arg1: memref<8x256xf32, #tpu.memory_space<vmem>>, %arg2: memref<256x64xf32, #tpu.memory_space<vmem>>, %arg3: memref<8x64xf32, #tpu.memory_space<vmem>>) attributes {dimension_semantics = [#tpu.dimension_semantics<parallel>], iteration_bounds = array<i64: 1>, scalar_prefetch = 0 : i64, scratch_operands = 0 : i64, tpu.core_type = #tpu.core_type<tc>, window_params = [{transform_indices = @transform_0, window_bounds = array<i64: 8, 256>}, {pipeline_mode = #tpu.pipeline_mode<synchronous>, transform_indices = @transform_1, window_bounds = array<i64: 256, 64>}, {transform_indices = @transform_2, window_bounds = array<i64: 8, 64>}]} {
    %c0 = arith.constant 0 : index
    %c0_0 = arith.constant 0 : index
    %0 = vector.load %arg1[%c0, %c0_0] : memref<8x256xf32, #tpu.memory_space<vmem>>, vector<8x256xf32>
    %c0_1 = arith.constant 0 : index
    %c0_2 = arith.constant 0 : index
    %1 = vector.load %arg2[%c0_1, %c0_2] : memref<256x64xf32, #tpu.memory_space<vmem>>, vector<256x64xf32>
    %cst = arith.constant dense<0.000000e+00> : vector<8x64xf32>
    %2 = tpu.matmul %0, %1, %cst {dimension_numbers = #tpu.dot_dimension_numbers<[1], [0], [0], [1], [0, 0, 1, 1], [], []>} : vector<8x256xf32>, vector<256x64xf32>, vector<8x64xf32> -> vector<8x64xf32>
    %c0_3 = arith.constant 0 : index
    %c0_4 = arith.constant 0 : index
    %3 = vector.load %arg3[%c0_3, %c0_4] : memref<8x64xf32, #tpu.memory_space<vmem>>, vector<8x64xf32>
    tpu.vector_store %arg3[%c0_3, %c0_4], %2 {strides = array<i32>} : memref<8x64xf32, #tpu.memory_space<vmem>>, vector<8x64xf32>,
    return
  }
  func.func @transform_0(%arg0: i32) -> (i32, i32) {
    %c0_i32 = arith.constant 0 : i32
    %c0_i32_0 = arith.constant 0 : i32
    return %arg0, %c0_i32 : i32, i32
  }
  func.func @transform_1(%arg0: i32) -> (i32, i32) {
    %c0_i32 = arith.constant 0 : i32
    %c0_i32_0 = arith.constant 0 : i32
    %c0_i32_1 = arith.constant 0 : i32
    return %c0_i32, %c0_i32_0 : i32, i32
  }
  func.func @transform_2(%arg0: i32) -> (i32, i32) {
    %c0_i32 = arith.constant 0 : i32
    %c0_i32_0 = arith.constant 0 : i32
    return %arg0, %c0_i32 : i32, i32
  }
}

</mosaic_0001>

<llo_original>
// kernel: tpu_custom_call.1
$region0: #{tpu_custom_call.1}
  #allocation0 [shape = 'u32[]', space=smem, size = 0x4, offset = 0x4, fixed_abs, tag = 'smem constant byte address 0x4 - core index']
  #allocation1 [shape = 'u32[144,128]{1,0:T(1,128)}', space=vmem, size = 0x12000, scoped, tag = 'internal scratch']
  %s0 = inlined_call_operand.vmem [shape: f32[1,256], index: 0, kind: input, shape index: {}]
  %s1 = inlined_call_operand.vmem [shape: f32[256,64], index: 1, kind: input, shape index: {}]
  %s2 = inlined_call_operand.hbm [shape: f32[1,64], index: 2, kind: output, shape index: {}]
  %s3 = sld [smem:[#allocation0]]
  $region18: #{tpu_custom_call.1} parent=0
    _
  %s5 = ssub.s32 1, %s3
  %s6 = scalar_select 0, %s5, %s3
  $region1: #{tpu_custom_call.1} parent=0
    #allocation2 [shape = 'u8[4096]{0}', space=vmem, size = 0x1000, scoped, tag = 'output window, operand 0, single buffered']
    #allocation3 [shape = 's32[1]{0}', space=sflag, size = 0x4, scoped, tag = 'scoped memory for tpu_custom_call.1']
    %7 = vsyncpa [#allocation3], 0
    // Predicated region
    $region2: #{tpu_custom_call.1} parent=1 // pred_check
      _
    $region3: #{tpu_custom_call.1} parent=1 // pred_check_branch
      %9 = sbr.rel (0) target = $region5
    $region4: #{tpu_custom_call.1} parent=1 // pred_region
      _
    $region5: #{tpu_custom_call.1} parent=1 // pred_fallthru
      _
    // Predicated region
    $region6: #{tpu_custom_call.1} parent=1 // pred_check
      _
    $region7: #{tpu_custom_call.1} parent=1 // pred_check_branch
      %11 = sbr.rel (0) target = $region9
    $region8: #{tpu_custom_call.1} parent=1 // pred_region
      _
    $region9: #{tpu_custom_call.1} parent=1 // pred_fallthru
      _
    %v12 = vld [vmem:[%s0] sm:$0x3]
    %v13 = vld [vmem:[%s0 + $0x2] sm:$0x3]
    %v14 = vld [vmem:[%s0 + $0x4] sm:$0x3]
    %v15 = vld [vmem:[%s0 + $0x6] sm:$0x3]
    %v16 = vld [vmem:[%s0 + $0x8] sm:$0x3]
    %v17 = vld [vmem:[%s0 + $0xa] sm:$0x3]
    %v18 = vld [vmem:[%s0 + $0xc] sm:$0x3]
    %v19 = vld [vmem:[%s0 + $0xe] sm:$0x3]
    %v20 = vld [vmem:[%s1] sm:$0xff]
    %v21 = vld [vmem:[%s1 + $0x8] sm:$0xff]
    %v22 = vld [vmem:[%s1 + $0x10] sm:$0xff]
    %v23 = vld [vmem:[%s1 + $0x18] sm:$0xff]
    %v24 = vld [vmem:[%s1 + $0x20] sm:$0xff]
    %v25 = vld [vmem:[%s1 + $0x28] sm:$0xff]
    %v26 = vld [vmem:[%s1 + $0x30] sm:$0xff]
    %v27 = vld [vmem:[%s1 + $0x38] sm:$0xff]
    %v28 = vld [vmem:[%s1 + $0x40] sm:$0xff]
    %v29 = vld [vmem:[%s1 + $0x48] sm:$0xff]
    %v30 = vld [vmem:[%s1 + $0x50] sm:$0xff]
    %v31 = vld [vmem:[%s1 + $0x58] sm:$0xff]
    %v32 = vld [vmem:[%s1 + $0x60] sm:$0xff]
    %v33 = vld [vmem:[%s1 + $0x68] sm:$0xff]
    %v34 = vld [vmem:[%s1 + $0x70] sm:$0xff]
    %v35 = vld [vmem:[%s1 + $0x78] sm:$0xff]
    %v36 = vld [vmem:[%s1 + $0x80] sm:$0xff]
    %v37 = vld [vmem:[%s1 + $0x88] sm:$0xff]
    %v38 = vld [vmem:[%s1 + $0x90] sm:$0xff]
    %v39 = vld [vmem:[%s1 + $0x98] sm:$0xff]
    %v40 = vld [vmem:[%s1 + $0xa0] sm:$0xff]
    %v41 = vld [vmem:[%s1 + $0xa8] sm:$0xff]
    %v42 = vld [vmem:[%s1 + $0xb0] sm:$0xff]
    %v43 = vld [vmem:[%s1 + $0xb8] sm:$0xff]
    %v44 = vld [vmem:[%s1 + $0xc0] sm:$0xff]
    %v45 = vld [vmem:[%s1 + $0xc8] sm:$0xff]
    %v46 = vld [vmem:[%s1 + $0xd0] sm:$0xff]
    %v47 = vld [vmem:[%s1 + $0xd8] sm:$0xff]
    %v48 = vld [vmem:[%s1 + $0xe0] sm:$0xff]
    %v49 = vld [vmem:[%s1 + $0xe8] sm:$0xff]
    %v50 = vld [vmem:[%s1 + $0xf0] sm:$0xff]
    %v51 = vld [vmem:[%s1 + $0xf8] sm:$0xff]
    %v60 = vcombine.low %v12, %v13
    %v61 = vcombine.low %v14, %v15
    %v62 = vcombine.low %v16, %v17
    %v63 = vcombine.low %v18, %v19
    %v65 = vunpack.c.l.s4 1966171168
    %v66 = vunpack.c.0.s8 %v65
    %v67 = vlaneseq
    %v68 = vshrl.u32 %v67, 7
    %v69 = vsub.s32 %v66, %v68
    %v70 = vrot.slane %v60, %v69
    %v72 = vunpack.c.l.s4 1966171168
    %v73 = vunpack.c.0.s8 %v72
    %v74 = vlaneseq
    %v75 = vshrl.u32 %v74, 7
    %v76 = vsub.s32 %v73, %v75
    %v77 = vrot.slane %v61, %v76
    %v79 = vunpack.c.l.s4 1966171168
    %v80 = vunpack.c.0.s8 %v79
    %v81 = vlaneseq
    %v82 = vshrl.u32 %v81, 7
    %v83 = vsub.s32 %v80, %v82
    %v84 = vrot.slane %v62, %v83
    %v86 = vunpack.c.l.s4 1966171168
    %v87 = vunpack.c.0.s8 %v86
    %v88 = vlaneseq
    %v89 = vshrl.u32 %v88, 7
    %v90 = vsub.s32 %v87, %v89
    %v91 = vrot.slane %v63, %v90
    %v92 = vcombine.low %v70, %v77
    %v93 = vcombine.high %v70, %v77
    %v94 = vcombine.low %v84, %v91
    %v95 = vcombine.high %v84, %v91
    %v97 = vunpack.c.l.s4 1966171168
    %v98 = vunpack.c.0.s8 %v97
    %v99 = vlaneseq
    %v100 = vshrl.u32 %v99, 7
    %v101 = vsub.s32 %v98, %v100
    %v102 = vrot.slane %v92, %v101
    %v104 = vunpack.c.l.s4 1966171168
    %v105 = vunpack.c.0.s8 %v104
    %v106 = vlaneseq
    %v107 = vshrl.u32 %v106, 7
    %v108 = vsub.s32 %v105, %v107
    %v109 = vrot.slane %v93, %v108
    %v111 = vunpack.c.l.s4 1966171168
    %v112 = vunpack.c.0.s8 %v111
    %v113 = vlaneseq
    %v114 = vshrl.u32 %v113, 7
    %v115 = vsub.s32 %v112, %v114
    %v116 = vrot.slane %v94, %v115
    %v118 = vunpack.c.l.s4 1966171168
    %v119 = vunpack.c.0.s8 %v118
    %v120 = vlaneseq
    %v121 = vshrl.u32 %v120, 7
    %v122 = vsub.s32 %v119, %v121
    %v123 = vrot.slane %v95, %v122
    %v124 = vcombine.low %v102, %v116
    %v125 = vcombine.low %v109, %v123
    %128 = vmatprep.subr.mxu0 0.0
    %129 = vmatpush1.msra.mxu0 %v35
    %130 = vmatprep.subr.mxu0 0.0
    %131 = vmatpush1.msra.mxu0 %v34
    %132 = vmatprep.subr.mxu0 0.0
    %133 = vmatpush1.msra.mxu0 %v33
    %134 = vmatprep.subr.mxu0 0.0
    %135 = vmatpush1.msra.mxu0 %v32
    %136 = vmatprep.subr.mxu0 0.0
    %137 = vmatpush1.msra.mxu0 %v31
    %138 = vmatprep.subr.mxu0 0.0
    %139 = vmatpush1.msra.mxu0 %v30
    %140 = vmatprep.subr.mxu0 0.0
    %141 = vmatpush1.msra.mxu0 %v29
    %142 = vmatprep.subr.mxu0 0.0
    %143 = vmatpush1.msra.mxu0 %v28
    %144 = vmatprep.subr.mxu0 0.0
    %145 = vmatpush1.msra.mxu0 %v27
    %146 = vmatprep.subr.mxu0 0.0
    %147 = vmatpush1.msra.mxu0 %v26
    %148 = vmatprep.subr.mxu0 0.0
    %149 = vmatpush1.msra.mxu0 %v25
    %150 = vmatprep.subr.mxu0 0.0
    %151 = vmatpush1.msra.mxu0 %v24
    %152 = vmatprep.subr.mxu0 0.0
    %153 = vmatpush1.msra.mxu0 %v23
    %154 = vmatprep.subr.mxu0 0.0
    %155 = vmatpush1.msra.mxu0 %v22
    %156 = vmatprep.subr.mxu0 0.0
    %157 = vmatpush1.msra.mxu0 %v21
    %158 = vmatprep.subr.mxu0 0.0
    %159 = vmatpush1.msra.mxu0 %v20
    %160 = vmatprep.subr.mxu0 0.0
    %161 = vmatpush2.msra.mxu0 %v51
    %162 = vmatprep.subr.mxu0 0.0
    %163 = vmatpush2.msra.mxu0 %v50
    %164 = vmatprep.subr.mxu0 0.0
    %165 = vmatpush2.msra.mxu0 %v49
    %166 = vmatprep.subr.mxu0 0.0
    %167 = vmatpush2.msra.mxu0 %v48
    %168 = vmatprep.subr.mxu0 0.0
    %169 = vmatpush2.msra.mxu0 %v47
    %170 = vmatprep.subr.mxu0 0.0
    %171 = vmatpush2.msra.mxu0 %v46
    %172 = vmatprep.subr.mxu0 0.0
    %173 = vmatpush2.msra.mxu0 %v45
    %174 = vmatprep.subr.mxu0 0.0
    %175 = vmatpush2.msra.mxu0 %v44
    %176 = vmatprep.subr.mxu0 0.0
    %177 = vmatpush2.msra.mxu0 %v43
    %178 = vmatprep.subr.mxu0 0.0
    %179 = vmatpush2.msra.mxu0 %v42
    %180 = vmatprep.subr.mxu0 0.0
    %181 = vmatpush2.msra.mxu0 %v41
    %182 = vmatprep.subr.mxu0 0.0
    %183 = vmatpush2.msra.mxu0 %v40
    %184 = vmatprep.subr.mxu0 0.0
    %185 = vmatpush2.msra.mxu0 %v39
    %186 = vmatprep.subr.mxu0 0.0
    %187 = vmatpush2.msra.mxu0 %v38
    %188 = vmatprep.subr.mxu0 0.0
    %189 = vmatpush2.msra.mxu0 %v37
    %190 = vmatprep.subr.mxu0 0.0
    %191 = vmatpush2.msra.mxu0 %v36
    %192 = vmatprep.mubr.f32.mxu0 %v125
    %193 = vmatmul.mubr.f32.gmra.mxu0 %v124
    %v194 = vpop.f32.mrf.mxu0
    %v195 = vadd.f32 0.0, %v194
    %v196 = vpop.f32.mrf.mxu0
    %197 = vdwg.mxu0
    %vm198 = vcmask 523264
    %199 = vst.msk [vmem:[#allocation2] sm:$0xff] %vm198, %v195
    // Predicated region
    $region10: #{tpu_custom_call.1} parent=1 // pred_check
      _
    $region11: #{tpu_custom_call.1} parent=1 // pred_check_branch
      %201 = sbr.rel (0) target = $region13
    $region12: #{tpu_custom_call.1} parent=1 // pred_region
      %s203 = ssub.s32 128, 16
      %204 = vsyncadd [#allocation3], %s203
      %s205 = sshll.u32 [#allocation2], 4
      %s206 = int_to_ptr.vmem [resolvable:$true] %s205
      %211 = dma.vmem_to_hbm [thread:$0]  %s206, 16, %s2, [#allocation3], 16, 16, 1
    $region13: #{tpu_custom_call.1} parent=1 // pred_fallthru
      _
    // Predicated region
    $region14: #{tpu_custom_call.1} parent=1 // pred_check
      _
    $region15: #{tpu_custom_call.1} parent=1 // pred_check_branch
      %213 = sbr.rel (0) target = $region17
    $region16: #{tpu_custom_call.1} parent=1 // pred_region
      %214 = dma.done [#allocation3], 128
    $region17: #{tpu_custom_call.1} parent=1 // pred_fallthru
      _
    %215 = vsyncpa [#allocation3], 1

</llo_original>
